<compile_context>
chip_gen: v7x
topology: tpu7x:2x2x1
jax: 0.10.0
libtpu: 0.0.40
codegen_flags: <defaults>
</compile_context>

<pallas_src>
import math

import jax
import jax.numpy as jnp
from jax.experimental import pallas as pl
from jax.experimental.pallas import tpu as pltpu

# Tile sizes are derived against this (double-buffered) budget, leaving headroom below
# v7x's 64 MiB per-TensorCore VMEM; the scoped limit is raised explicitly for v5e/v6e.
_VMEM_TILE_BUDGET = 40 * 1024 * 1024
_VMEM_LIMIT_BYTES = 48 * 1024 * 1024


def _round_up(x, m):
    return (x + m - 1) // m * m


def _itemsize(dt):
    return jnp.dtype(dt).itemsize


# --------------------------------------------------------------------------- #
# Kernels
# --------------------------------------------------------------------------- #

def _linear_resident_kernel(x_ref, w_ref, b_ref, o_ref):
    """Weight-resident GEMM: the whole (C, OUT) weight stays in VMEM.

    x_ref: (tm, C)   w_ref: (C, OUT)   b_ref: (1, OUT) f32   o_ref: (tm, OUT)
    Activation tile is cast to the weight dtype (bf16) in-kernel; accumulation is f32.
    """
    acc = jnp.dot(x_ref[...].astype(w_ref.dtype), w_ref[...],
                  preferred_element_type=jnp.float32)
    o_ref[...] = (acc + b_ref[...]).astype(o_ref.dtype)


def _linear_ktiled_kernel(x_ref, w_ref, b_ref, o_ref, acc_ref):
    """Streaming GEMM with a contraction grid axis (k innermost, 'arbitrary').

    x_ref: (tm, tk)  w_ref: (tk, tn)  b_ref: (1, tn) f32  o_ref: (tm, tn)
    acc_ref: (tm, tn) f32 VMEM scratch.
    """
    k = pl.program_id(2)

    @pl.when(k == 0)
    def _():
        acc_ref[...] = jnp.zeros_like(acc_ref)

    acc_ref[...] += jnp.dot(x_ref[...].astype(w_ref.dtype), w_ref[...],
                            preferred_element_type=jnp.float32)

    @pl.when(k == pl.num_programs(2) - 1)
    def _():
        o_ref[...] = (acc_ref[...] + b_ref[...]).astype(o_ref.dtype)


# --------------------------------------------------------------------------- #
# Wrapper
# --------------------------------------------------------------------------- #

def _pick_tk(C, tk_max=1024):
    """Largest multiple-of-128 divisor of C that is <= tk_max (or C itself)."""
    if C <= tk_max:
        return C
    for cand in range(tk_max, 127, -128):
        if C % cand == 0:
            return cand
    # TODO(synk): zero-pad C when it has no lane-aligned divisor and the full-C block
    # overflows VMEM; typical model widths (multiples of 128) never hit this.
    return C


def pallas_linear(x2d, w_t, bias, *, out_dtype=None, mode="auto"):
    """y = x2d @ w_t + bias as a Pallas TPU GEMM.

    x2d:  (M, C) activations (cast to w_t.dtype inside the kernel)
    w_t:  (C, OUT) weight, already transposed and stored in the compute dtype (bf16)
    bias: (OUT,), added after f32 accumulation
    mode: "auto" | "resident" | "stream"
    """
    M, C = x2d.shape
    C_w, OUT = w_t.shape
    assert C_w == C
    if out_dtype is None:
        out_dtype = x2d.dtype

    xb, wb, ob = _itemsize(x2d.dtype), _itemsize(w_t.dtype), _itemsize(out_dtype)
    bias2d = bias.reshape(1, OUT).astype(jnp.float32)

    # ---------------- weight-resident path ----------------
    def resident_footprint(tm_):
        # budget 2x everything (double buffering), even for constant-index blocks
        return 2 * (tm_ * C * xb + C * OUT * wb + OUT * 4 + tm_ * OUT * ob)

    tm_res = None
    for cand in (512, 256, 128, 64, 32, 16, 8):
        tm_c = min(cand, _round_up(M, 8))
        if resident_footprint(tm_c) <= _VMEM_TILE_BUDGET:
            tm_res = tm_c
            break

    use_resident = (mode == "resident") or (mode == "auto" and tm_res is not None)

    if use_resident:
        tm = tm_res if tm_res is not None else min(8, _round_up(M, 8))
        grid = (pl.cdiv(M, tm),)
        return pl.pallas_call(
            _linear_resident_kernel,
            out_shape=jax.ShapeDtypeStruct((M, OUT), out_dtype),
            grid_spec=pltpu.PrefetchScalarGridSpec(
                num_scalar_prefetch=0,
                grid=grid,
                in_specs=[
                    pl.BlockSpec((tm, C), lambda i: (i, 0)),
                    pl.BlockSpec((C, OUT), lambda i: (0, 0)),   # constant -> DMA'd once
                    pl.BlockSpec((1, OUT), lambda i: (0, 0)),
                ],
                out_specs=pl.BlockSpec((tm, OUT), lambda i: (i, 0)),
            ),
            compiler_params=pltpu.CompilerParams(
                dimension_semantics=("parallel",),
                vmem_limit_bytes=_VMEM_LIMIT_BYTES),
        )(x2d, w_t, bias2d)

    # ---------------- streaming (K-tiled) path ----------------
    tm = min(512, _round_up(M, 8))
    tn = OUT if OUT <= 512 else 512          # multiple of 128 (or full OUT)
    tk = _pick_tk(C)

    def stream_footprint(tm_, tn_, tk_):
        return (2 * (tm_ * tk_ * xb + tk_ * tn_ * wb + tn_ * 4 + tm_ * tn_ * ob)
                + tm_ * tn_ * 4)             # + f32 accumulator scratch

    while stream_footprint(tm, tn, tk) > _VMEM_TILE_BUDGET and tm > 64:
        tm = max(64, tm // 2)
    while stream_footprint(tm, tn, tk) > _VMEM_TILE_BUDGET and tn >= 256:
        tn = max(128, (tn // 2) // 128 * 128)

    grid = (pl.cdiv(M, tm), pl.cdiv(OUT, tn), C // tk)
    return pl.pallas_call(
        _linear_ktiled_kernel,
        out_shape=jax.ShapeDtypeStruct((M, OUT), out_dtype),
        grid_spec=pltpu.PrefetchScalarGridSpec(
            num_scalar_prefetch=0,
            grid=grid,
            in_specs=[
                pl.BlockSpec((tm, tk), lambda i, j, k: (i, k)),
                pl.BlockSpec((tk, tn), lambda i, j, k: (k, j)),
                pl.BlockSpec((1, tn), lambda i, j, k: (0, j)),
            ],
            out_specs=pl.BlockSpec((tm, tn), lambda i, j, k: (i, j)),
            scratch_shapes=[pltpu.VMEM((tm, tn), jnp.float32)],
        ),
        compiler_params=pltpu.CompilerParams(
            dimension_semantics=("parallel", "parallel", "arbitrary"),
            vmem_limit_bytes=_VMEM_LIMIT_BYTES),
    )(x2d, w_t, bias2d)


# --------------------------------------------------------------------------- #
# Module-level API
# --------------------------------------------------------------------------- #

def init_linear_projection_params(key, dim, heads=8, dim_head=64,
                                  dtype=jnp.float32, compute_dtype=jnp.bfloat16):
    """nn.Linear-style init (U(-1/sqrt(fan_in), +bound)).

    Stores f32 masters plus compute-dtype (bf16) copies — cast ONCE here, not per
    forward — and the pre-fused QKV weight/bias so the self-attention path needs no
    per-call concatenate.
    """
    inner_dim = dim_head * heads
    k1, k2, k3, k4 = jax.random.split(key, 4)
    bound = 1.0 / math.sqrt(dim)
    wq_t = jax.random.uniform(k1, (dim, inner_dim), dtype, -bound, bound)
    bq = jax.random.uniform(k2, (inner_dim,), dtype, -bound, bound)
    wkv_t = jax.random.uniform(k3, (dim, inner_dim * 2), dtype, -bound, bound)
    bkv = jax.random.uniform(k4, (inner_dim * 2,), dtype, -bound, bound)
    cdt = dtype if compute_dtype is None else compute_dtype
    return {
        # f32 masters (reference / training)
        "wq_t": wq_t, "bq": bq, "wkv_t": wkv_t, "bkv": bkv,
        # MXU compute copies + pre-fused QKV weight/bias
        "wq_c": wq_t.astype(cdt),
        "wkv_c": wkv_t.astype(cdt),
        "wqkv_c": jnp.concatenate([wq_t, wkv_t], axis=1).astype(cdt),
        "bqkv": jnp.concatenate([bq, bkv], axis=0).astype(jnp.float32),
    }


def linear_projection_forward(params, x, heads, attn_kv=None, *,
                              mode="auto", out_dtype=None):
    """Pallas equivalent of LinearProjection.forward.

    x:       (B, N, C)
    attn_kv: optional (N_kv, C) — broadcast over batch like the PyTorch module.
    returns: q (B, heads, N, hd), k (B, heads, N_kv, hd), v (B, heads, N_kv, hd)
    """
    B, N, C = x.shape
    inner_dim = params["bq"].shape[0]
    head_dim = inner_dim // heads
    x2d = x.reshape(B * N, C)

    if attn_kv is None:
        # self-attention: fused QKV GEMM (weight pre-fused at init), activation read once
        y = pallas_linear(x2d, params["wqkv_c"], params["bqkv"],
                          mode=mode, out_dtype=out_dtype)
        q_flat = y[:, :inner_dim]
        kv = (y[:, inner_dim:]
              .reshape(B, N, 2, heads, head_dim)
              .transpose(2, 0, 3, 1, 4))
        k, v = kv[0], kv[1]
    else:
        # cross-attention: KV GEMM runs once on (N_kv, C); permute at batch=1 and
        # broadcast afterwards so the projection never materializes B copies itself.
        N_kv = attn_kv.shape[0]
        q_flat = pallas_linear(x2d, params["wq_c"], params["bq"],
                               mode=mode, out_dtype=out_dtype)
        kv1 = pallas_linear(attn_kv, params["wkv_c"], params["bkv"],
                            mode=mode, out_dtype=out_dtype)
        kv1 = (kv1.reshape(1, N_kv, 2, heads, head_dim)
                  .transpose(2, 0, 3, 1, 4))          # (2, 1, heads, N_kv, hd)
        # TODO(synk): a downstream attention kernel could consume the batch-1 K/V views
        # directly and broadcast in its own BlockSpec; materialized here only to match
        # the PyTorch module's output contract.
        k = jnp.broadcast_to(kv1[0], (B, heads, N_kv, head_dim))
        v = jnp.broadcast_to(kv1[1], (B, heads, N_kv, head_dim))

    # TODO(synk): the (B, heads, N, head_dim) permute could be folded into out_specs with
    # a head-aligned scatter; kept in JAX so the kernel store stays lane-dense
    # (head_dim < 128 direct stores would hit masked vst.msk partial-store penalties).
    q = q_flat.reshape(B, N, heads, head_dim).transpose(0, 2, 1, 3)
    return q, k, v


# --------------------------------------------------------------------------- #
# Self-test
# --------------------------------------------------------------------------- #

if __name__ == "__main__":
    # small shapes: batch=2, seq=8, dim=32, heads=4, head_dim=8 -> inner_dim=32
    B, N, C = 2, 8, 32
    heads, dim_head = 4, 8
    inner_dim = heads * dim_head

    key = jax.random.PRNGKey(0)
    kx, kp, kkv = jax.random.split(key, 3)
    x = jax.random.normal(kx, (B, N, C), jnp.float32)
    params = init_linear_projection_params(kp, C, heads=heads, dim_head=dim_head)

    # f32 reference (kernel computes on the MXU in bf16 -> loosened tolerances)
    x2d = x.reshape(B * N, C)
    q_ref = (x2d @ params["wq_t"] + params["bq"]).reshape(
        B, N, heads, dim_head).transpose(0, 2, 1, 3)
    kv_ref = (x2d @ params["wkv_t"] + params["bkv"]).reshape(
        B, N, 2, heads, dim_head).transpose(2, 0, 3, 1, 4)
    tol = dict(atol=3e-2, rtol=3e-2)

    # ---- self-attention path (weight-resident kernel) ----
    q, k, v = linear_projection_forward(params, x, heads)
    jax.block_until_ready((q, k, v))
    assert q.shape == (B, heads, N, dim_head)
    assert k.shape == (B, heads, N, dim_head)
    assert v.shape == (B, heads, N, dim_head)
    assert jnp.allclose(q, q_ref, **tol)
    assert jnp.allclose(k, kv_ref[0], **tol)
    assert jnp.allclose(v, kv_ref[1], **tol)

    # ---- self-attention path, forced K-tiled streaming kernel ----
    qs, ks, vs = linear_projection_forward(params, x, heads, mode="stream")
    jax.block_until_ready((qs, ks, vs))
    assert jnp.allclose(qs, q_ref, **tol)
    assert jnp.allclose(ks, kv_ref[0], **tol)
    assert jnp.allclose(vs, kv_ref[1], **tol)

    # ---- cross-attention path (attn_kv provided, KV computed once) ----
    N_kv = 16
    attn_kv = jax.random.normal(kkv, (N_kv, C), jnp.float32)
    q2, k2, v2 = linear_projection_forward(params, x, heads, attn_kv=attn_kv)
    jax.block_until_ready((q2, k2, v2))
    kv2_ref = (attn_kv @ params["wkv_t"] + params["bkv"]).reshape(
        1, N_kv, 2, heads, dim_head).transpose(2, 0, 3, 1, 4)
    kv2_ref = jnp.broadcast_to(kv2_ref, (2, B, heads, N_kv, dim_head))
    assert q2.shape == (B, heads, N, dim_head)
    assert k2.shape == (B, heads, N_kv, dim_head)
    assert v2.shape == (B, heads, N_kv, dim_head)
    assert jnp.allclose(q2, q_ref, **tol)
    assert jnp.allclose(k2, kv2_ref[0], **tol)
    assert jnp.allclose(v2, kv2_ref[1], **tol)

    print("KERNEL_OK")
</pallas_src>

<mosaic_0001>
module attributes {stable_mosaic.version = 11 : i64} {
  func.func @_linear_resident_kernel(%arg0: i32, %arg1: memref<16x32xf32, #tpu.memory_space<vmem>>, %arg2: memref<32x96xbf16, #tpu.memory_space<vmem>>, %arg3: memref<1x96xf32, #tpu.memory_space<vmem>>, %arg4: memref<16x96xf32, #tpu.memory_space<vmem>>) attributes {dimension_semantics = [#tpu.dimension_semantics<parallel>], iteration_bounds = array<i64: 1>, scalar_prefetch = 0 : i64, scratch_operands = 0 : i64, tpu.core_type = #tpu.core_type<tc>, window_params = [{transform_indices = @transform_0, window_bounds = array<i64: 16, 32>}, {pipeline_mode = #tpu.pipeline_mode<synchronous>, transform_indices = @transform_1, window_bounds = array<i64: 32, 96>}, {pipeline_mode = #tpu.pipeline_mode<synchronous>, transform_indices = @transform_2, window_bounds = array<i64: 1, 96>}, {transform_indices = @transform_3, window_bounds = array<i64: 16, 96>}]} {
    %c0 = arith.constant 0 : index
    %c0_0 = arith.constant 0 : index
    %0 = vector.load %arg1[%c0, %c0_0] : memref<16x32xf32, #tpu.memory_space<vmem>>, vector<16x32xf32>
    %1 = arith.truncf %0 : vector<16x32xf32> to vector<16x32xbf16>
    %c0_1 = arith.constant 0 : index
    %c0_2 = arith.constant 0 : index
    %2 = vector.load %arg2[%c0_1, %c0_2] : memref<32x96xbf16, #tpu.memory_space<vmem>>, vector<32x96xbf16>
    %cst = arith.constant dense<0.000000e+00> : vector<16x96xf32>
    %3 = tpu.matmul %1, %2, %cst {dimension_numbers = #tpu.dot_dimension_numbers<[1], [0], [0], [1], [0, 0, 1, 1], [], []>} : vector<16x32xbf16>, vector<32x96xbf16>, vector<16x96xf32> -> vector<16x96xf32>
    %c0_3 = arith.constant 0 : index
    %c0_4 = arith.constant 0 : index
    %4 = vector.load %arg3[%c0_3, %c0_4] : memref<1x96xf32, #tpu.memory_space<vmem>>, vector<1x96xf32>
    %5 = vector.broadcast %4 : vector<1x96xf32> to vector<16x96xf32>
    %6 = arith.addf %3, %5 : vector<16x96xf32>
    %c0_5 = arith.constant 0 : index
    %c0_6 = arith.constant 0 : index
    %7 = vector.load %arg4[%c0_5, %c0_6] : memref<16x96xf32, #tpu.memory_space<vmem>>, vector<16x96xf32>
    tpu.vector_store %arg4[%c0_5, %c0_6], %6 {strides = array<i32>} : memref<16x96xf32, #tpu.memory_space<vmem>>, vector<16x96xf32>,
    return
  }
  func.func @transform_0(%arg0: i32) -> (i32, i32) {
    %c0_i32 = arith.constant 0 : i32
    %c0_i32_0 = arith.constant 0 : i32
    return %arg0, %c0_i32 : i32, i32
  }
  func.func @transform_1(%arg0: i32) -> (i32, i32) {
    %c0_i32 = arith.constant 0 : i32
    %c0_i32_0 = arith.constant 0 : i32
    %c0_i32_1 = arith.constant 0 : i32
    return %c0_i32, %c0_i32_0 : i32, i32
  }
  func.func @transform_2(%arg0: i32) -> (i32, i32) {
    %c0_i32 = arith.constant 0 : i32
    %c0_i32_0 = arith.constant 0 : i32
    %c0_i32_1 = arith.constant 0 : i32
    return %c0_i32, %c0_i32_0 : i32, i32
  }
  func.func @transform_3(%arg0: i32) -> (i32, i32) {
    %c0_i32 = arith.constant 0 : i32
    %c0_i32_0 = arith.constant 0 : i32
    return %arg0, %c0_i32 : i32, i32
  }
}

</mosaic_0001>

<llo_original>
// kernel: tpu_custom_call.1
$region0: #{tpu_custom_call.1}
  #allocation0 [shape = 'u32[]', space=smem, size = 0x4, offset = 0x4, fixed_abs, tag = 'smem constant byte address 0x4 - core index']
  #allocation1 [shape = 'u32[144,128]{1,0:T(1,128)}', space=vmem, size = 0x12000, scoped, tag = 'internal scratch']
  %s0 = inlined_call_operand.hbm [shape: f32[16,32], index: 0, kind: input, shape index: {}]
  %s1 = inlined_call_operand.hbm [shape: bf16[32,96], index: 1, kind: input, shape index: {}]
  %s2 = inlined_call_operand.vmem [shape: f32[1,96], index: 2, kind: input, shape index: {}]
  %s3 = inlined_call_operand.hbm [shape: f32[16,96], index: 3, kind: output, shape index: {}]
  %s4 = sld [smem:[#allocation0]]
  $region30: #{tpu_custom_call.1} parent=0
    _
  %s6 = ssub.s32 1, %s4
  %s7 = scalar_select 0, %s6, %s4
  $region1: #{tpu_custom_call.1} parent=0
    #allocation2 [shape = 'u8[8192]{0}', space=vmem, size = 0x2000, scoped, tag = 'input window, operand 0, single buffered']
    #allocation3 [shape = 's32[1]{0}', space=sflag, size = 0x4, scoped, tag = 'scoped memory for tpu_custom_call.1']
    #allocation4 [shape = 's32[1]{0}', space=sflag, size = 0x4, scoped, tag = 'scoped memory for tpu_custom_call.1']
    #allocation5 [shape = 'u8[8192]{0}', space=vmem, size = 0x2000, scoped, tag = 'input window, operand 1, single buffered']
    #allocation6 [shape = 's32[1]{0}', space=sflag, size = 0x4, scoped, tag = 'scoped memory for tpu_custom_call.1']
    #allocation7 [shape = 'u8[8192]{0}', space=vmem, size = 0x2000, scoped, tag = 'output window, operand 0, single buffered']
    %8 = vsyncpa [#allocation3], 0
    %9 = vsyncpa [#allocation6], 0
    %10 = vsyncpa [#allocation4], 0
    // Predicated region
    $region2: #{tpu_custom_call.1} parent=1 // pred_check
      _
    $region3: #{tpu_custom_call.1} parent=1 // pred_check_branch
      %12 = sbr.rel (0) target = $region5
    $region4: #{tpu_custom_call.1} parent=1 // pred_region
      %s14 = ssub.s32 256, 256
      %15 = vsyncadd [#allocation3], %s14
      %s16 = sshll.u32 [#allocation2], 4
      %s17 = int_to_ptr.vmem [resolvable:$true] %s16
      %22 = dma.hbm_to_vmem [thread:$0]  %s0, 256, %s17, [#allocation3], 128, 128, 8
    $region5: #{tpu_custom_call.1} parent=1 // pred_fallthru
      _
    // Predicated region
    $region6: #{tpu_custom_call.1} parent=1 // pred_check
      _
    $region7: #{tpu_custom_call.1} parent=1 // pred_check_branch
      %24 = sbr.rel (0) target = $region9
    $region8: #{tpu_custom_call.1} parent=1 // pred_region
      %s26 = ssub.s32 256, 256
      %27 = vsyncadd [#allocation6], %s26
      %s28 = sshll.u32 [#allocation5], 4
      %s29 = int_to_ptr.vmem [resolvable:$true] %s28
      %34 = dma.hbm_to_vmem [thread:$0]  %s1, 256, %s29, [#allocation6], 64, 64, 4
    $region9: #{tpu_custom_call.1} parent=1 // pred_fallthru
      _
    // Predicated region
    $region10: #{tpu_custom_call.1} parent=1 // pred_check
      _
    $region11: #{tpu_custom_call.1} parent=1 // pred_check_branch
      %36 = sbr.rel (0) target = $region13
    $region12: #{tpu_custom_call.1} parent=1 // pred_region
      _
    $region13: #{tpu_custom_call.1} parent=1 // pred_fallthru
      _
    // Predicated region
    $region14: #{tpu_custom_call.1} parent=1 // pred_check
      _
    $region15: #{tpu_custom_call.1} parent=1 // pred_check_branch
      %38 = sbr.rel (0) target = $region17
    $region16: #{tpu_custom_call.1} parent=1 // pred_region
      %39 = dma.done [#allocation3], 256
    $region17: #{tpu_custom_call.1} parent=1 // pred_fallthru
      _
    // Predicated region
    $region18: #{tpu_custom_call.1} parent=1 // pred_check
      _
    $region19: #{tpu_custom_call.1} parent=1 // pred_check_branch
      %41 = sbr.rel (0) target = $region21
    $region20: #{tpu_custom_call.1} parent=1 // pred_region
      %42 = dma.done [#allocation6], 256
    $region21: #{tpu_custom_call.1} parent=1 // pred_fallthru
      _
    %v44 = vld [vmem:[#allocation2] sm:$0xff]
    %v45 = vld [vmem:[#allocation2 + $0x8] sm:$0xff]
    %v46 = vpack.c.bf16 %v45, %v44
    %v47 = vld [vmem:[#allocation5] sm:$0xf]
    %v48 = vld [vmem:[#allocation5 + $0x4] sm:$0xf]
    %v49 = vld [vmem:[#allocation5 + $0x8] sm:$0xf]
    %v50 = vld [vmem:[#allocation5 + $0xc] sm:$0xf]
    %v51 = vld [vmem:[%s2] sm:$0x1]
    %v53 = vlaneseq
    %v54 = vshrl.u32 %v53, 7
    %v55 = vsub.s32 0, %v54
    %v56 = vrot.slane %v51, %v55
    %v62 = vunpack.c.l.b16 %v47
    %v63 = vunpack.c.l.b16 %v48
    %v64 = vunpack.c.l.b16 %v49
    %v65 = vunpack.c.l.b16 %v50
    %v66 = vpack.c.b16 %v63, %v62
    %v67 = vpack.c.b16 %v65, %v64
    %vm70 = vcmask 261120
    %v72 = vsel %vm70, %v46, 0
    %74 = vmatprep.subr.bf16.mxu0 0
    %75 = vmatpush1.bf16.msra.mxu0 %v66
    %76 = vmatprep.subr.bf16.mxu0 0
    %77 = vmatpush1.bf16.msra.mxu0 %v67
    %78 = vmatprep.subr.bf16.mxu0 0
    %79 = vmatpush1.bf16.msra.mxu0 0
    %80 = vmatprep.subr.bf16.mxu0 0
    %81 = vmatpush1.bf16.msra.mxu0 0
    %82 = vmatprep.subr.bf16.mxu0 0
    %83 = vmatpush1.bf16.msra.mxu0 0
    %84 = vmatprep.subr.bf16.mxu0 0
    %85 = vmatpush1.bf16.msra.mxu0 0
    %86 = vmatprep.subr.bf16.mxu0 0
    %87 = vmatpush1.bf16.msra.mxu0 0
    %88 = vmatprep.subr.bf16.mxu0 0
    %89 = vmatpush1.bf16.msra.mxu0 0
    %90 = vmatprep.subr.bf16.mxu0 0
    %91 = vmatpush1.bf16.msra.mxu0 0
    %92 = vmatprep.subr.bf16.mxu0 0
    %93 = vmatpush1.bf16.msra.mxu0 0
    %94 = vmatprep.subr.bf16.mxu0 0
    %95 = vmatpush1.bf16.msra.mxu0 0
    %96 = vmatprep.subr.bf16.mxu0 0
    %97 = vmatpush1.bf16.msra.mxu0 0
    %98 = vmatprep.subr.bf16.mxu0 0
    %99 = vmatpush1.bf16.msra.mxu0 0
    %100 = vmatprep.subr.bf16.mxu0 0
    %101 = vmatpush1.bf16.msra.mxu0 0
    %102 = vmatprep.subr.bf16.mxu0 0
    %103 = vmatpush1.bf16.msra.mxu0 0
    %104 = vmatprep.subr.bf16.mxu0 0
    %105 = vmatpush1.bf16.msra.mxu0 0
    %106 = vmatprep.mubr.bf16.mxu0 0
    %107 = vmatmul.mubr.bf16.gmra.mrb[0].mxu0 %v72
    %v108 = vpop.f32.mrb[0].mxu0
    %v109 = vadd.f32 %v56, %v108
    %v110 = vpop.f32.mrb[0].mxu0
    %v111 = vpop.f32.mrb[0].mxu0
    %v112 = vadd.f32 %v56, %v111
    %v113 = vpop.f32.mrb[0].mxu0
    %114 = vdwg.mxu0
    %vm115 = vcmask 785408
    %116 = vst.msk [vmem:[#allocation7] sm:$0xff] %vm115, %v109
    %117 = vst.msk [vmem:[#allocation7 + $0x8] sm:$0xff] %vm115, %v112
    // Predicated region
    $region22: #{tpu_custom_call.1} parent=1 // pred_check
      _
    $region23: #{tpu_custom_call.1} parent=1 // pred_check_branch
      %119 = sbr.rel (0) target = $region25
    $region24: #{tpu_custom_call.1} parent=1 // pred_region
      %s121 = ssub.s32 256, 256
      %122 = vsyncadd [#allocation4], %s121
      %s123 = sshll.u32 [#allocation7], 4
      %s124 = int_to_ptr.vmem [resolvable:$true] %s123
      %129 = dma.vmem_to_hbm [thread:$0]  %s124, 256, %s3, [#allocation4], 128, 128, 8
    $region25: #{tpu_custom_call.1} parent=1 // pred_fallthru
      _
    // Predicated region
    $region26: #{tpu_custom_call.1} parent=1 // pred_check
      _
    $region27: #{tpu_custom_call.1} parent=1 // pred_check_branch
      %131 = sbr.rel (0) target = $region29
    $region28: #{tpu_custom_call.1} parent=1 // pred_region
      %132 = dma.done [#allocation4], 256
    $region29: #{tpu_custom_call.1} parent=1 // pred_fallthru
      _
    %133 = vsyncpa [#allocation3], 1
    %134 = vsyncpa [#allocation6], 1
    %135 = vsyncpa [#allocation4], 1

</llo_original>
